<compile_context>
chip_gen: v6e
topology: v6e:2x2x1
jax: 0.10.0
libtpu: 0.0.40
codegen_flags: <defaults>
</compile_context>

<pallas_src>
import jax
import jax.numpy as jnp
from jax.experimental import pallas as pl
from jax.experimental.pallas import tpu as pltpu


def convblock_kernel(x_ref, dw_ref, pw_ref, o_ref):
    """Fused depthwise(2x2, stride 1, pad 0) + pointwise(1x1) for one image.

    x_ref  : (1, Cin, H, W)     VMEM   NCHW input block (W on lanes)
    dw_ref : (Cin, 4)           SMEM   depthwise weights, col index = kh*2 + kw
    pw_ref : (Cout, Cin)        SMEM   pointwise weights
    o_ref  : (1, Cout, Ho, Wo)  VMEM   NCHW output block
    """
    Cin = x_ref.shape[1]
    H, W = x_ref.shape[2], x_ref.shape[3]
    Cout = o_ref.shape[1]
    Ho, Wo = H - 1, W - 1

    # --- depthwise 2x2 conv (VPU; taps are lane/sublane shifted slices) ---
    y = []
    for c in range(Cin):
        xc = x_ref[0, c].astype(jnp.float32)              # (H, W), f32 accumulate
        y.append(xc[0:Ho, 0:Wo] * dw_ref[c, 0]
                 + xc[0:Ho, 1:W] * dw_ref[c, 1]
                 + xc[1:H, 0:Wo] * dw_ref[c, 2]
                 + xc[1:H, 1:W] * dw_ref[c, 3])           # (Ho, Wo)

    # --- pointwise 1x1 conv (VPU; Cin/Cout far too small for the MXU) ---
    for o in range(Cout):
        acc = y[0] * pw_ref[o, 0]
        for c in range(1, Cin):
            acc = acc + y[c] * pw_ref[o, c]
        o_ref[0, o] = acc.astype(o_ref.dtype)


def conv_block_pallas(x_nchw, dw_weight, pw_weight):
    """ConvBlock.forward.

    x_nchw    : (N, Cin, H, W)       -- PyTorch NCHW input
    dw_weight : (Cin, 1, 2, 2)       -- nn.Conv2d(groups=Cin) weight
    pw_weight : (Cout, Cin, 1, 1)    -- 1x1 conv weight
    returns   : (N, Cout, H-1, W-1)  -- NCHW, same as PyTorch
    """
    N, Cin, H, W = x_nchw.shape
    Cout = pw_weight.shape[0]
    Ho, Wo = H - 1, W - 1

    # Tiny weight flattening (host-side glue; scalars land in SMEM).
    dw_flat = dw_weight[:, 0, :, :].reshape(Cin, 4)   # (Cin, 4); col = kh*2+kw
    pw_flat = pw_weight[:, :, 0, 0]                   # (Cout, Cin)

    return pl.pallas_call(
        convblock_kernel,
        out_shape=jax.ShapeDtypeStruct((N, Cout, Ho, Wo), x_nchw.dtype),
        grid_spec=pltpu.PrefetchScalarGridSpec(
            num_scalar_prefetch=0,
            grid=(N,),
            in_specs=[
                pl.BlockSpec((1, Cin, H, W), lambda n: (n, 0, 0, 0)),
                pl.BlockSpec(memory_space=pltpu.MemorySpace.SMEM),
                pl.BlockSpec(memory_space=pltpu.MemorySpace.SMEM),
            ],
            out_specs=pl.BlockSpec((1, Cout, Ho, Wo), lambda n: (n, 0, 0, 0)),
        ),
        compiler_params=pltpu.CompilerParams(
            dimension_semantics=("parallel",)),
    )(x_nchw, dw_flat, pw_flat)


def conv_block_reference(x, dw_weight, pw_weight):
    """Pure-JAX NCHW reference with identical semantics (for validation)."""
    N, Cin, H, W = x.shape
    Ho, Wo = H - 1, W - 1
    dw = dw_weight[:, 0]                                      # (Cin, 2, 2)
    w = lambda kh, kw: dw[:, kh, kw][None, :, None, None]     # (1, Cin, 1, 1)
    y = (x[:, :, 0:Ho, 0:Wo] * w(0, 0)
         + x[:, :, 0:Ho, 1:W] * w(0, 1)
         + x[:, :, 1:H, 0:Wo] * w(1, 0)
         + x[:, :, 1:H, 1:W] * w(1, 1))                       # (N, Cin, Ho, Wo)
    pw = pw_weight[:, :, 0, 0]                                # (Cout, Cin)
    return jnp.einsum("nchw,oc->nohw", y, pw)


if __name__ == "__main__":
    # Small deterministic setup consistent with ConvBlock(in_planes=4, out_planes=8).
    N, Cin, Cout, H, W = 2, 4, 8, 16, 16

    key = jax.random.PRNGKey(0)
    kx, kdw, kpw = jax.random.split(key, 3)
    x = jax.random.normal(kx, (N, Cin, H, W), dtype=jnp.float32)
    dw_weight = jax.random.normal(kdw, (Cin, 1, 2, 2), dtype=jnp.float32) * 0.1
    pw_weight = jax.random.normal(kpw, (Cout, Cin, 1, 1), dtype=jnp.float32) * 0.1

    out = conv_block_pallas(x, dw_weight, pw_weight)
    out = jax.block_until_ready(out)

    ref = conv_block_reference(x, dw_weight, pw_weight)
    assert out.shape == (N, Cout, H - 1, W - 1), out.shape
    assert jnp.allclose(out, ref, atol=1e-5, rtol=1e-5), "mismatch vs reference"

    print("KERNEL_OK")
</pallas_src>

<mosaic_0001>
module attributes {stable_mosaic.version = 11 : i64} {
  func.func @convblock_kernel(%arg0: i32, %arg1: memref<1x4x16x16xf32, #tpu.memory_space<vmem>>, %arg2: memref<4x4xf32, #tpu.memory_space<smem>>, %arg3: memref<8x4xf32, #tpu.memory_space<smem>>, %arg4: memref<1x8x15x15xf32, #tpu.memory_space<vmem>>) attributes {dimension_semantics = [#tpu.dimension_semantics<parallel>], iteration_bounds = array<i64: 2>, scalar_prefetch = 0 : i64, scratch_operands = 0 : i64, tpu.core_type = #tpu.core_type<tc>, window_params = [{transform_indices = @transform_0, window_bounds = array<i64: 1, 4, 16, 16>}, {transform_indices = @transform_1, window_bounds = array<i64: 4, 4>}, {transform_indices = @transform_2, window_bounds = array<i64: 8, 4>}, {transform_indices = @transform_3, window_bounds = array<i64: 1, 8, 15, 15>}]} {
    %c0 = arith.constant 0 : index
    %c0_0 = arith.constant 0 : index
    %c0_1 = arith.constant 0 : index
    %c0_2 = arith.constant 0 : index
    %0 = vector.load %arg1[%c0, %c0_0, %c0_1, %c0_2] : memref<1x4x16x16xf32, #tpu.memory_space<vmem>>, vector<1x1x16x16xf32>
    %1 = vector.shape_cast %0 : vector<1x1x16x16xf32> to vector<16x16xf32>
    %2 = vector.extract_strided_slice %1 {offsets = [0, 0], sizes = [15, 15], strides = [1, 1]} : vector<16x16xf32> to vector<15x15xf32>
    %c0_3 = arith.constant 0 : index
    %c0_4 = arith.constant 0 : index
    %3 = memref.load %arg2[%c0_3, %c0_4] : memref<4x4xf32, #tpu.memory_space<smem>>
    %4 = vector.broadcast %3 : f32 to vector<15x15xf32>
    %5 = arith.mulf %2, %4 : vector<15x15xf32>
    %6 = vector.extract_strided_slice %1 {offsets = [0, 1], sizes = [15, 15], strides = [1, 1]} : vector<16x16xf32> to vector<15x15xf32>
    %c0_5 = arith.constant 0 : index
    %c1 = arith.constant 1 : index
    %7 = memref.load %arg2[%c0_5, %c1] : memref<4x4xf32, #tpu.memory_space<smem>>
    %8 = vector.broadcast %7 : f32 to vector<15x15xf32>
    %9 = arith.mulf %6, %8 : vector<15x15xf32>
    %10 = arith.addf %5, %9 : vector<15x15xf32>
    %11 = vector.extract_strided_slice %1 {offsets = [1, 0], sizes = [15, 15], strides = [1, 1]} : vector<16x16xf32> to vector<15x15xf32>
    %c0_6 = arith.constant 0 : index
    %c2 = arith.constant 2 : index
    %12 = memref.load %arg2[%c0_6, %c2] : memref<4x4xf32, #tpu.memory_space<smem>>
    %13 = vector.broadcast %12 : f32 to vector<15x15xf32>
    %14 = arith.mulf %11, %13 : vector<15x15xf32>
    %15 = arith.addf %10, %14 : vector<15x15xf32>
    %16 = vector.extract_strided_slice %1 {offsets = [1, 1], sizes = [15, 15], strides = [1, 1]} : vector<16x16xf32> to vector<15x15xf32>
    %c0_7 = arith.constant 0 : index
    %c3 = arith.constant 3 : index
    %17 = memref.load %arg2[%c0_7, %c3] : memref<4x4xf32, #tpu.memory_space<smem>>
    %18 = vector.broadcast %17 : f32 to vector<15x15xf32>
    %19 = arith.mulf %16, %18 : vector<15x15xf32>
    %20 = arith.addf %15, %19 : vector<15x15xf32>
    %c0_8 = arith.constant 0 : index
    %c1_9 = arith.constant 1 : index
    %c0_10 = arith.constant 0 : index
    %c0_11 = arith.constant 0 : index
    %21 = vector.load %arg1[%c0_8, %c1_9, %c0_10, %c0_11] : memref<1x4x16x16xf32, #tpu.memory_space<vmem>>, vector<1x1x16x16xf32>
    %22 = vector.shape_cast %21 : vector<1x1x16x16xf32> to vector<16x16xf32>
    %23 = vector.extract_strided_slice %22 {offsets = [0, 0], sizes = [15, 15], strides = [1, 1]} : vector<16x16xf32> to vector<15x15xf32>
    %c1_12 = arith.constant 1 : index
    %c0_13 = arith.constant 0 : index
    %24 = memref.load %arg2[%c1_12, %c0_13] : memref<4x4xf32, #tpu.memory_space<smem>>
    %25 = vector.broadcast %24 : f32 to vector<15x15xf32>
    %26 = arith.mulf %23, %25 : vector<15x15xf32>
    %27 = vector.extract_strided_slice %22 {offsets = [0, 1], sizes = [15, 15], strides = [1, 1]} : vector<16x16xf32> to vector<15x15xf32>
    %c1_14 = arith.constant 1 : index
    %c1_15 = arith.constant 1 : index
    %28 = memref.load %arg2[%c1_14, %c1_15] : memref<4x4xf32, #tpu.memory_space<smem>>
    %29 = vector.broadcast %28 : f32 to vector<15x15xf32>
    %30 = arith.mulf %27, %29 : vector<15x15xf32>
    %31 = arith.addf %26, %30 : vector<15x15xf32>
    %32 = vector.extract_strided_slice %22 {offsets = [1, 0], sizes = [15, 15], strides = [1, 1]} : vector<16x16xf32> to vector<15x15xf32>
    %c1_16 = arith.constant 1 : index
    %c2_17 = arith.constant 2 : index
    %33 = memref.load %arg2[%c1_16, %c2_17] : memref<4x4xf32, #tpu.memory_space<smem>>
    %34 = vector.broadcast %33 : f32 to vector<15x15xf32>
    %35 = arith.mulf %32, %34 : vector<15x15xf32>
    %36 = arith.addf %31, %35 : vector<15x15xf32>
    %37 = vector.extract_strided_slice %22 {offsets = [1, 1], sizes = [15, 15], strides = [1, 1]} : vector<16x16xf32> to vector<15x15xf32>
    %c1_18 = arith.constant 1 : index
    %c3_19 = arith.constant 3 : index
    %38 = memref.load %arg2[%c1_18, %c3_19] : memref<4x4xf32, #tpu.memory_space<smem>>
    %39 = vector.broadcast %38 : f32 to vector<15x15xf32>
    %40 = arith.mulf %37, %39 : vector<15x15xf32>
    %41 = arith.addf %36, %40 : vector<15x15xf32>
    %c0_20 = arith.constant 0 : index
    %c2_21 = arith.constant 2 : index
    %c0_22 = arith.constant 0 : index
    %c0_23 = arith.constant 0 : index
    %42 = vector.load %arg1[%c0_20, %c2_21, %c0_22, %c0_23] : memref<1x4x16x16xf32, #tpu.memory_space<vmem>>, vector<1x1x16x16xf32>
    %43 = vector.shape_cast %42 : vector<1x1x16x16xf32> to vector<16x16xf32>
    %44 = vector.extract_strided_slice %43 {offsets = [0, 0], sizes = [15, 15], strides = [1, 1]} : vector<16x16xf32> to vector<15x15xf32>
    %c2_24 = arith.constant 2 : index
    %c0_25 = arith.constant 0 : index
    %45 = memref.load %arg2[%c2_24, %c0_25] : memref<4x4xf32, #tpu.memory_space<smem>>
    %46 = vector.broadcast %45 : f32 to vector<15x15xf32>
    %47 = arith.mulf %44, %46 : vector<15x15xf32>
    %48 = vector.extract_strided_slice %43 {offsets = [0, 1], sizes = [15, 15], strides = [1, 1]} : vector<16x16xf32> to vector<15x15xf32>
    %c2_26 = arith.constant 2 : index
    %c1_27 = arith.constant 1 : index
    %49 = memref.load %arg2[%c2_26, %c1_27] : memref<4x4xf32, #tpu.memory_space<smem>>
    %50 = vector.broadcast %49 : f32 to vector<15x15xf32>
    %51 = arith.mulf %48, %50 : vector<15x15xf32>
    %52 = arith.addf %47, %51 : vector<15x15xf32>
    %53 = vector.extract_strided_slice %43 {offsets = [1, 0], sizes = [15, 15], strides = [1, 1]} : vector<16x16xf32> to vector<15x15xf32>
    %c2_28 = arith.constant 2 : index
    %c2_29 = arith.constant 2 : index
    %54 = memref.load %arg2[%c2_28, %c2_29] : memref<4x4xf32, #tpu.memory_space<smem>>
    %55 = vector.broadcast %54 : f32 to vector<15x15xf32>
    %56 = arith.mulf %53, %55 : vector<15x15xf32>
    %57 = arith.addf %52, %56 : vector<15x15xf32>
    %58 = vector.extract_strided_slice %43 {offsets = [1, 1], sizes = [15, 15], strides = [1, 1]} : vector<16x16xf32> to vector<15x15xf32>
    %c2_30 = arith.constant 2 : index
    %c3_31 = arith.constant 3 : index
    %59 = memref.load %arg2[%c2_30, %c3_31] : memref<4x4xf32, #tpu.memory_space<smem>>
    %60 = vector.broadcast %59 : f32 to vector<15x15xf32>
    %61 = arith.mulf %58, %60 : vector<15x15xf32>
    %62 = arith.addf %57, %61 : vector<15x15xf32>
    %c0_32 = arith.constant 0 : index
    %c3_33 = arith.constant 3 : index
    %c0_34 = arith.constant 0 : index
    %c0_35 = arith.constant 0 : index
    %63 = vector.load %arg1[%c0_32, %c3_33, %c0_34, %c0_35] : memref<1x4x16x16xf32, #tpu.memory_space<vmem>>, vector<1x1x16x16xf32>
    %64 = vector.shape_cast %63 : vector<1x1x16x16xf32> to vector<16x16xf32>
    %65 = vector.extract_strided_slice %64 {offsets = [0, 0], sizes = [15, 15], strides = [1, 1]} : vector<16x16xf32> to vector<15x15xf32>
    %c3_36 = arith.constant 3 : index
    %c0_37 = arith.constant 0 : index
    %66 = memref.load %arg2[%c3_36, %c0_37] : memref<4x4xf32, #tpu.memory_space<smem>>
    %67 = vector.broadcast %66 : f32 to vector<15x15xf32>
    %68 = arith.mulf %65, %67 : vector<15x15xf32>
    %69 = vector.extract_strided_slice %64 {offsets = [0, 1], sizes = [15, 15], strides = [1, 1]} : vector<16x16xf32> to vector<15x15xf32>
    %c3_38 = arith.constant 3 : index
    %c1_39 = arith.constant 1 : index
    %70 = memref.load %arg2[%c3_38, %c1_39] : memref<4x4xf32, #tpu.memory_space<smem>>
    %71 = vector.broadcast %70 : f32 to vector<15x15xf32>
    %72 = arith.mulf %69, %71 : vector<15x15xf32>
    %73 = arith.addf %68, %72 : vector<15x15xf32>
    %74 = vector.extract_strided_slice %64 {offsets = [1, 0], sizes = [15, 15], strides = [1, 1]} : vector<16x16xf32> to vector<15x15xf32>
    %c3_40 = arith.constant 3 : index
    %c2_41 = arith.constant 2 : index
    %75 = memref.load %arg2[%c3_40, %c2_41] : memref<4x4xf32, #tpu.memory_space<smem>>
    %76 = vector.broadcast %75 : f32 to vector<15x15xf32>
    %77 = arith.mulf %74, %76 : vector<15x15xf32>
    %78 = arith.addf %73, %77 : vector<15x15xf32>
    %79 = vector.extract_strided_slice %64 {offsets = [1, 1], sizes = [15, 15], strides = [1, 1]} : vector<16x16xf32> to vector<15x15xf32>
    %c3_42 = arith.constant 3 : index
    %c3_43 = arith.constant 3 : index
    %80 = memref.load %arg2[%c3_42, %c3_43] : memref<4x4xf32, #tpu.memory_space<smem>>
    %81 = vector.broadcast %80 : f32 to vector<15x15xf32>
    %82 = arith.mulf %79, %81 : vector<15x15xf32>
    %83 = arith.addf %78, %82 : vector<15x15xf32>
    %c0_44 = arith.constant 0 : index
    %c0_45 = arith.constant 0 : index
    %84 = memref.load %arg3[%c0_44, %c0_45] : memref<8x4xf32, #tpu.memory_space<smem>>
    %85 = vector.broadcast %84 : f32 to vector<15x15xf32>
    %86 = arith.mulf %20, %85 : vector<15x15xf32>
    %c0_46 = arith.constant 0 : index
    %c1_47 = arith.constant 1 : index
    %87 = memref.load %arg3[%c0_46, %c1_47] : memref<8x4xf32, #tpu.memory_space<smem>>
    %88 = vector.broadcast %87 : f32 to vector<15x15xf32>
    %89 = arith.mulf %41, %88 : vector<15x15xf32>
    %90 = arith.addf %86, %89 : vector<15x15xf32>
    %c0_48 = arith.constant 0 : index
    %c2_49 = arith.constant 2 : index
    %91 = memref.load %arg3[%c0_48, %c2_49] : memref<8x4xf32, #tpu.memory_space<smem>>
    %92 = vector.broadcast %91 : f32 to vector<15x15xf32>
    %93 = arith.mulf %62, %92 : vector<15x15xf32>
    %94 = arith.addf %90, %93 : vector<15x15xf32>
    %c0_50 = arith.constant 0 : index
    %c3_51 = arith.constant 3 : index
    %95 = memref.load %arg3[%c0_50, %c3_51] : memref<8x4xf32, #tpu.memory_space<smem>>
    %96 = vector.broadcast %95 : f32 to vector<15x15xf32>
    %97 = arith.mulf %83, %96 : vector<15x15xf32>
    %98 = arith.addf %94, %97 : vector<15x15xf32>
    %c0_52 = arith.constant 0 : index
    %c0_53 = arith.constant 0 : index
    %c0_54 = arith.constant 0 : index
    %c0_55 = arith.constant 0 : index
    %99 = vector.load %arg4[%c0_52, %c0_53, %c0_54, %c0_55] : memref<1x8x15x15xf32, #tpu.memory_space<vmem>>, vector<1x1x15x15xf32>
    %100 = vector.shape_cast %99 : vector<1x1x15x15xf32> to vector<15x15xf32>
    %101 = vector.shape_cast %98 : vector<15x15xf32> to vector<1x1x15x15xf32>
    tpu.vector_store %arg4[%c0_52, %c0_53, %c0_54, %c0_55], %101 {strides = array<i32>} : memref<1x8x15x15xf32, #tpu.memory_space<vmem>>, vector<1x1x15x15xf32>,
    %c1_56 = arith.constant 1 : index
    %c0_57 = arith.constant 0 : index
    %102 = memref.load %arg3[%c1_56, %c0_57] : memref<8x4xf32, #tpu.memory_space<smem>>
    %103 = vector.broadcast %102 : f32 to vector<15x15xf32>
    %104 = arith.mulf %20, %103 : vector<15x15xf32>
    %c1_58 = arith.constant 1 : index
    %c1_59 = arith.constant 1 : index
    %105 = memref.load %arg3[%c1_58, %c1_59] : memref<8x4xf32, #tpu.memory_space<smem>>
    %106 = vector.broadcast %105 : f32 to vector<15x15xf32>
    %107 = arith.mulf %41, %106 : vector<15x15xf32>
    %108 = arith.addf %104, %107 : vector<15x15xf32>
    %c1_60 = arith.constant 1 : index
    %c2_61 = arith.constant 2 : index
    %109 = memref.load %arg3[%c1_60, %c2_61] : memref<8x4xf32, #tpu.memory_space<smem>>
    %110 = vector.broadcast %109 : f32 to vector<15x15xf32>
    %111 = arith.mulf %62, %110 : vector<15x15xf32>
    %112 = arith.addf %108, %111 : vector<15x15xf32>
    %c1_62 = arith.constant 1 : index
    %c3_63 = arith.constant 3 : index
    %113 = memref.load %arg3[%c1_62, %c3_63] : memref<8x4xf32, #tpu.memory_space<smem>>
    %114 = vector.broadcast %113 : f32 to vector<15x15xf32>
    %115 = arith.mulf %83, %114 : vector<15x15xf32>
    %116 = arith.addf %112, %115 : vector<15x15xf32>
    %c0_64 = arith.constant 0 : index
    %c1_65 = arith.constant 1 : index
    %c0_66 = arith.constant 0 : index
    %c0_67 = arith.constant 0 : index
    %117 = vector.load %arg4[%c0_64, %c1_65, %c0_66, %c0_67] : memref<1x8x15x15xf32, #tpu.memory_space<vmem>>, vector<1x1x15x15xf32>
    %118 = vector.shape_cast %117 : vector<1x1x15x15xf32> to vector<15x15xf32>
    %119 = vector.shape_cast %116 : vector<15x15xf32> to vector<1x1x15x15xf32>
    tpu.vector_store %arg4[%c0_64, %c1_65, %c0_66, %c0_67], %119 {strides = array<i32>} : memref<1x8x15x15xf32, #tpu.memory_space<vmem>>, vector<1x1x15x15xf32>,
    %c2_68 = arith.constant 2 : index
    %c0_69 = arith.constant 0 : index
    %120 = memref.load %arg3[%c2_68, %c0_69] : memref<8x4xf32, #tpu.memory_space<smem>>
    %121 = vector.broadcast %120 : f32 to vector<15x15xf32>
    %122 = arith.mulf %20, %121 : vector<15x15xf32>
    %c2_70 = arith.constant 2 : index
    %c1_71 = arith.constant 1 : index
    %123 = memref.load %arg3[%c2_70, %c1_71] : memref<8x4xf32, #tpu.memory_space<smem>>
    %124 = vector.broadcast %123 : f32 to vector<15x15xf32>
    %125 = arith.mulf %41, %124 : vector<15x15xf32>
    %126 = arith.addf %122, %125 : vector<15x15xf32>
    %c2_72 = arith.constant 2 : index
    %c2_73 = arith.constant 2 : index
    %127 = memref.load %arg3[%c2_72, %c2_73] : memref<8x4xf32, #tpu.memory_space<smem>>
    %128 = vector.broadcast %127 : f32 to vector<15x15xf32>
    %129 = arith.mulf %62, %128 : vector<15x15xf32>
    %130 = arith.addf %126, %129 : vector<15x15xf32>
    %c2_74 = arith.constant 2 : index
    %c3_75 = arith.constant 3 : index
    %131 = memref.load %arg3[%c2_74, %c3_75] : memref<8x4xf32, #tpu.memory_space<smem>>
    %132 = vector.broadcast %131 : f32 to vector<15x15xf32>
    %133 = arith.mulf %83, %132 : vector<15x15xf32>
    %134 = arith.addf %130, %133 : vector<15x15xf32>
    %c0_76 = arith.constant 0 : index
    %c2_77 = arith.constant 2 : index
    %c0_78 = arith.constant 0 : index
    %c0_79 = arith.constant 0 : index
    %135 = vector.load %arg4[%c0_76, %c2_77, %c0_78, %c0_79] : memref<1x8x15x15xf32, #tpu.memory_space<vmem>>, vector<1x1x15x15xf32>
    %136 = vector.shape_cast %135 : vector<1x1x15x15xf32> to vector<15x15xf32>
    %137 = vector.shape_cast %134 : vector<15x15xf32> to vector<1x1x15x15xf32>
    tpu.vector_store %arg4[%c0_76, %c2_77, %c0_78, %c0_79], %137 {strides = array<i32>} : memref<1x8x15x15xf32, #tpu.memory_space<vmem>>, vector<1x1x15x15xf32>,
    %c3_80 = arith.constant 3 : index
    %c0_81 = arith.constant 0 : index
    %138 = memref.load %arg3[%c3_80, %c0_81] : memref<8x4xf32, #tpu.memory_space<smem>>
    %139 = vector.broadcast %138 : f32 to vector<15x15xf32>
    %140 = arith.mulf %20, %139 : vector<15x15xf32>
    %c3_82 = arith.constant 3 : index
    %c1_83 = arith.constant 1 : index
    %141 = memref.load %arg3[%c3_82, %c1_83] : memref<8x4xf32, #tpu.memory_space<smem>>
    %142 = vector.broadcast %141 : f32 to vector<15x15xf32>
    %143 = arith.mulf %41, %142 : vector<15x15xf32>
    %144 = arith.addf %140, %143 : vector<15x15xf32>
    %c3_84 = arith.constant 3 : index
    %c2_85 = arith.constant 2 : index
    %145 = memref.load %arg3[%c3_84, %c2_85] : memref<8x4xf32, #tpu.memory_space<smem>>
    %146 = vector.broadcast %145 : f32 to vector<15x15xf32>
    %147 = arith.mulf %62, %146 : vector<15x15xf32>
    %148 = arith.addf %144, %147 : vector<15x15xf32>
    %c3_86 = arith.constant 3 : index
    %c3_87 = arith.constant 3 : index
    %149 = memref.load %arg3[%c3_86, %c3_87] : memref<8x4xf32, #tpu.memory_space<smem>>
    %150 = vector.broadcast %149 : f32 to vector<15x15xf32>
    %151 = arith.mulf %83, %150 : vector<15x15xf32>
    %152 = arith.addf %148, %151 : vector<15x15xf32>
    %c0_88 = arith.constant 0 : index
    %c3_89 = arith.constant 3 : index
    %c0_90 = arith.constant 0 : index
    %c0_91 = arith.constant 0 : index
    %153 = vector.load %arg4[%c0_88, %c3_89, %c0_90, %c0_91] : memref<1x8x15x15xf32, #tpu.memory_space<vmem>>, vector<1x1x15x15xf32>
    %154 = vector.shape_cast %153 : vector<1x1x15x15xf32> to vector<15x15xf32>
    %155 = vector.shape_cast %152 : vector<15x15xf32> to vector<1x1x15x15xf32>
    tpu.vector_store %arg4[%c0_88, %c3_89, %c0_90, %c0_91], %155 {strides = array<i32>} : memref<1x8x15x15xf32, #tpu.memory_space<vmem>>, vector<1x1x15x15xf32>,
    %c4 = arith.constant 4 : index
    %c0_92 = arith.constant 0 : index
    %156 = memref.load %arg3[%c4, %c0_92] : memref<8x4xf32, #tpu.memory_space<smem>>
    %157 = vector.broadcast %156 : f32 to vector<15x15xf32>
    %158 = arith.mulf %20, %157 : vector<15x15xf32>
    %c4_93 = arith.constant 4 : index
    %c1_94 = arith.constant 1 : index
    %159 = memref.load %arg3[%c4_93, %c1_94] : memref<8x4xf32, #tpu.memory_space<smem>>
    %160 = vector.broadcast %159 : f32 to vector<15x15xf32>
    %161 = arith.mulf %41, %160 : vector<15x15xf32>
    %162 = arith.addf %158, %161 : vector<15x15xf32>
    %c4_95 = arith.constant 4 : index
    %c2_96 = arith.constant 2 : index
    %163 = memref.load %arg3[%c4_95, %c2_96] : memref<8x4xf32, #tpu.memory_space<smem>>
    %164 = vector.broadcast %163 : f32 to vector<15x15xf32>
    %165 = arith.mulf %62, %164 : vector<15x15xf32>
    %166 = arith.addf %162, %165 : vector<15x15xf32>
    %c4_97 = arith.constant 4 : index
    %c3_98 = arith.constant 3 : index
    %167 = memref.load %arg3[%c4_97, %c3_98] : memref<8x4xf32, #tpu.memory_space<smem>>
    %168 = vector.broadcast %167 : f32 to vector<15x15xf32>
    %169 = arith.mulf %83, %168 : vector<15x15xf32>
    %170 = arith.addf %166, %169 : vector<15x15xf32>
    %c0_99 = arith.constant 0 : index
    %c4_100 = arith.constant 4 : index
    %c0_101 = arith.constant 0 : index
    %c0_102 = arith.constant 0 : index
    %171 = vector.load %arg4[%c0_99, %c4_100, %c0_101, %c0_102] : memref<1x8x15x15xf32, #tpu.memory_space<vmem>>, vector<1x1x15x15xf32>
    %172 = vector.shape_cast %171 : vector<1x1x15x15xf32> to vector<15x15xf32>
    %173 = vector.shape_cast %170 : vector<15x15xf32> to vector<1x1x15x15xf32>
    tpu.vector_store %arg4[%c0_99, %c4_100, %c0_101, %c0_102], %173 {strides = array<i32>} : memref<1x8x15x15xf32, #tpu.memory_space<vmem>>, vector<1x1x15x15xf32>,
    %c5 = arith.constant 5 : index
    %c0_103 = arith.constant 0 : index
    %174 = memref.load %arg3[%c5, %c0_103] : memref<8x4xf32, #tpu.memory_space<smem>>
    %175 = vector.broadcast %174 : f32 to vector<15x15xf32>
    %176 = arith.mulf %20, %175 : vector<15x15xf32>
    %c5_104 = arith.constant 5 : index
    %c1_105 = arith.constant 1 : index
    %177 = memref.load %arg3[%c5_104, %c1_105] : memref<8x4xf32, #tpu.memory_space<smem>>
    %178 = vector.broadcast %177 : f32 to vector<15x15xf32>
    %179 = arith.mulf %41, %178 : vector<15x15xf32>
    %180 = arith.addf %176, %179 : vector<15x15xf32>
    %c5_106 = arith.constant 5 : index
    %c2_107 = arith.constant 2 : index
    %181 = memref.load %arg3[%c5_106, %c2_107] : memref<8x4xf32, #tpu.memory_space<smem>>
    %182 = vector.broadcast %181 : f32 to vector<15x15xf32>
    %183 = arith.mulf %62, %182 : vector<15x15xf32>
    %184 = arith.addf %180, %183 : vector<15x15xf32>
    %c5_108 = arith.constant 5 : index
    %c3_109 = arith.constant 3 : index
    %185 = memref.load %arg3[%c5_108, %c3_109] : memref<8x4xf32, #tpu.memory_space<smem>>
    %186 = vector.broadcast %185 : f32 to vector<15x15xf32>
    %187 = arith.mulf %83, %186 : vector<15x15xf32>
    %188 = arith.addf %184, %187 : vector<15x15xf32>
    %c0_110 = arith.constant 0 : index
    %c5_111 = arith.constant 5 : index
    %c0_112 = arith.constant 0 : index
    %c0_113 = arith.constant 0 : index
    %189 = vector.load %arg4[%c0_110, %c5_111, %c0_112, %c0_113] : memref<1x8x15x15xf32, #tpu.memory_space<vmem>>, vector<1x1x15x15xf32>
    %190 = vector.shape_cast %189 : vector<1x1x15x15xf32> to vector<15x15xf32>
    %191 = vector.shape_cast %188 : vector<15x15xf32> to vector<1x1x15x15xf32>
    tpu.vector_store %arg4[%c0_110, %c5_111, %c0_112, %c0_113], %191 {strides = array<i32>} : memref<1x8x15x15xf32, #tpu.memory_space<vmem>>, vector<1x1x15x15xf32>,
    %c6 = arith.constant 6 : index
    %c0_114 = arith.constant 0 : index
    %192 = memref.load %arg3[%c6, %c0_114] : memref<8x4xf32, #tpu.memory_space<smem>>
    %193 = vector.broadcast %192 : f32 to vector<15x15xf32>
    %194 = arith.mulf %20, %193 : vector<15x15xf32>
    %c6_115 = arith.constant 6 : index
    %c1_116 = arith.constant 1 : index
    %195 = memref.load %arg3[%c6_115, %c1_116] : memref<8x4xf32, #tpu.memory_space<smem>>
    %196 = vector.broadcast %195 : f32 to vector<15x15xf32>
    %197 = arith.mulf %41, %196 : vector<15x15xf32>
    %198 = arith.addf %194, %197 : vector<15x15xf32>
    %c6_117 = arith.constant 6 : index
    %c2_118 = arith.constant 2 : index
    %199 = memref.load %arg3[%c6_117, %c2_118] : memref<8x4xf32, #tpu.memory_space<smem>>
    %200 = vector.broadcast %199 : f32 to vector<15x15xf32>
    %201 = arith.mulf %62, %200 : vector<15x15xf32>
    %202 = arith.addf %198, %201 : vector<15x15xf32>
    %c6_119 = arith.constant 6 : index
    %c3_120 = arith.constant 3 : index
    %203 = memref.load %arg3[%c6_119, %c3_120] : memref<8x4xf32, #tpu.memory_space<smem>>
    %204 = vector.broadcast %203 : f32 to vector<15x15xf32>
    %205 = arith.mulf %83, %204 : vector<15x15xf32>
    %206 = arith.addf %202, %205 : vector<15x15xf32>
    %c0_121 = arith.constant 0 : index
    %c6_122 = arith.constant 6 : index
    %c0_123 = arith.constant 0 : index
    %c0_124 = arith.constant 0 : index
    %207 = vector.load %arg4[%c0_121, %c6_122, %c0_123, %c0_124] : memref<1x8x15x15xf32, #tpu.memory_space<vmem>>, vector<1x1x15x15xf32>
    %208 = vector.shape_cast %207 : vector<1x1x15x15xf32> to vector<15x15xf32>
    %209 = vector.shape_cast %206 : vector<15x15xf32> to vector<1x1x15x15xf32>
    tpu.vector_store %arg4[%c0_121, %c6_122, %c0_123, %c0_124], %209 {strides = array<i32>} : memref<1x8x15x15xf32, #tpu.memory_space<vmem>>, vector<1x1x15x15xf32>,
    %c7 = arith.constant 7 : index
    %c0_125 = arith.constant 0 : index
    %210 = memref.load %arg3[%c7, %c0_125] : memref<8x4xf32, #tpu.memory_space<smem>>
    %211 = vector.broadcast %210 : f32 to vector<15x15xf32>
    %212 = arith.mulf %20, %211 : vector<15x15xf32>
    %c7_126 = arith.constant 7 : index
    %c1_127 = arith.constant 1 : index
    %213 = memref.load %arg3[%c7_126, %c1_127] : memref<8x4xf32, #tpu.memory_space<smem>>
    %214 = vector.broadcast %213 : f32 to vector<15x15xf32>
    %215 = arith.mulf %41, %214 : vector<15x15xf32>
    %216 = arith.addf %212, %215 : vector<15x15xf32>
    %c7_128 = arith.constant 7 : index
    %c2_129 = arith.constant 2 : index
    %217 = memref.load %arg3[%c7_128, %c2_129] : memref<8x4xf32, #tpu.memory_space<smem>>
    %218 = vector.broadcast %217 : f32 to vector<15x15xf32>
    %219 = arith.mulf %62, %218 : vector<15x15xf32>
    %220 = arith.addf %216, %219 : vector<15x15xf32>
    %c7_130 = arith.constant 7 : index
    %c3_131 = arith.constant 3 : index
    %221 = memref.load %arg3[%c7_130, %c3_131] : memref<8x4xf32, #tpu.memory_space<smem>>
    %222 = vector.broadcast %221 : f32 to vector<15x15xf32>
    %223 = arith.mulf %83, %222 : vector<15x15xf32>
    %224 = arith.addf %220, %223 : vector<15x15xf32>
    %c0_132 = arith.constant 0 : index
    %c7_133 = arith.constant 7 : index
    %c0_134 = arith.constant 0 : index
    %c0_135 = arith.constant 0 : index
    %225 = vector.load %arg4[%c0_132, %c7_133, %c0_134, %c0_135] : memref<1x8x15x15xf32, #tpu.memory_space<vmem>>, vector<1x1x15x15xf32>
    %226 = vector.shape_cast %225 : vector<1x1x15x15xf32> to vector<15x15xf32>
    %227 = vector.shape_cast %224 : vector<15x15xf32> to vector<1x1x15x15xf32>
    tpu.vector_store %arg4[%c0_132, %c7_133, %c0_134, %c0_135], %227 {strides = array<i32>} : memref<1x8x15x15xf32, #tpu.memory_space<vmem>>, vector<1x1x15x15xf32>,
    return
  }
  func.func @transform_0(%arg0: i32) -> (i32, i32, i32, i32) {
    %c0_i32 = arith.constant 0 : i32
    %c0_i32_0 = arith.constant 0 : i32
    %c0_i32_1 = arith.constant 0 : i32
    %c0_i32_2 = arith.constant 0 : i32
    return %arg0, %c0_i32, %c0_i32_0, %c0_i32_1 : i32, i32, i32, i32
  }
  func.func @transform_1(%arg0: i32) -> (i32, i32) {
    %c0_i32 = arith.constant 0 : i32
    %c0_i32_0 = arith.constant 0 : i32
    %c0_i32_1 = arith.constant 0 : i32
    return %c0_i32, %c0_i32_0 : i32, i32
  }
  func.func @transform_2(%arg0: i32) -> (i32, i32) {
    %c0_i32 = arith.constant 0 : i32
    %c0_i32_0 = arith.constant 0 : i32
    %c0_i32_1 = arith.constant 0 : i32
    return %c0_i32, %c0_i32_0 : i32, i32
  }
  func.func @transform_3(%arg0: i32) -> (i32, i32, i32, i32) {
    %c0_i32 = arith.constant 0 : i32
    %c0_i32_0 = arith.constant 0 : i32
    %c0_i32_1 = arith.constant 0 : i32
    %c0_i32_2 = arith.constant 0 : i32
    return %arg0, %c0_i32, %c0_i32_0, %c0_i32_1 : i32, i32, i32, i32
  }
}

</mosaic_0001>

<llo_original>
// kernel: tpu_custom_call.1
$region0: #{tpu_custom_call.1}
  #allocation0 [shape = 'u32[]', space=smem, size = 0x4, offset = 0x4, fixed_abs, tag = 'smem constant byte address 0x4 - core index']
  #allocation1 [shape = 'u32[144,128]{1,0:T(1,128)}', space=vmem, size = 0x12000, scoped, tag = 'internal scratch']
  %s0 = inlined_call_operand.hbm [shape: f32[2,4,16,16], index: 0, kind: input, shape index: {}]
  %s1 = inlined_call_operand.vmem [shape: f32[4,4], index: 1, kind: input, shape index: {}]
  %s2 = inlined_call_operand.vmem [shape: f32[8,4], index: 2, kind: input, shape index: {}]
  %s3 = inlined_call_operand.vmem [shape: f32[2,8,15,15], index: 3, kind: output, shape index: {}]
  %s4 = sld [smem:[#allocation0]]
  $region57: #{tpu_custom_call.1} parent=0
    _
  %s6 = ssub.s32 1, %s4
  %s7 = scalar_select 0, %s6, %s4
  $region1: #{tpu_custom_call.1} parent=0
    #allocation2 [shape = 'u8[65536]{0}', space=vmem, size = 0x10000, scoped, tag = 'input window, operand 0']
    #allocation3 [shape = 's32[2]{0}', space=sflag, size = 0x8, scoped, tag = 'scoped memory for tpu_custom_call.1']
    #allocation4 [shape = 's32[2]{0}', space=sflag, size = 0x8, scoped, tag = 'scoped memory for tpu_custom_call.1']
    #allocation5 [shape = 'u8[2048]{0}', space=smem, size = 0x800, scoped, tag = 'input window, operand 1, single buffered']
    #allocation6 [shape = 'u8[4096]{0}', space=smem, size = 0x1000, scoped, tag = 'input window, operand 2, single buffered']
    #allocation7 [shape = 's32[1]{0}', space=sflag, size = 0x4, scoped, tag = 'scoped memory for tpu_custom_call.1']
    %8 = vsyncpa [#allocation3], 0
    %s9 = scalar_lea.sflag [#allocation3], 1
    %10 = vsyncpa %s9, 0
    %11 = vsyncpa [#allocation4], 0
    %12 = vsyncpa [#allocation7], 0
    loop: start=0, step=1, limit=4
    $region2: #{tpu_custom_call.1} parent=1 // loop_pre_header
      _
    $region3: #{tpu_custom_call.1} parent=1 // loop_header
      %s14 = sphi 0, %s18
      %p15 = scmp.ge.s32.totalorder %s14, 4
      %s24 = sphi 0, %s26
      %s27 = sphi 0, %s24
      %s28 = sphi 0, %s27
      %s44 = sphi 0, %s28
      %s48 = sphi 0, %s48
      %s50 = sphi 0, %s48
      %s51 = sphi 0, %s50
      %s65 = sphi 0, %s51
      %s69 = sphi 0, %s69
      %s71 = sphi 0, %s69
      %s72 = sphi 0, %s71
      %s86 = sphi 0, %s72
      %s92 = sphi 0, %s94
      %s95 = sphi 0, %s92
      %s96 = sphi 0, %s95
      %s112 = sphi 0, %s96
    $region4: #{tpu_custom_call.1} parent=1 // loop_header_branch
      %17 = sbr.rel (%p15) target = $region8
    $region5: #{tpu_custom_call.1} parent=1 // loop_body
      %s19 = ssub.s32 %s14, 1
      %s20 = ssub.s32 %s14, 2
      %s21 = sadd.s32 %s14, 1
      %s22 = ssub.s32 %s14, %s21
      %p23 = scmp.eq.s32.totalorder %s22, 0
      %s25 = sadd.s32 %s24, 1
      %s26 = scalar_select %p23, %s24, %s25
      %p29 = pneg %p23
      %p30 = scmp.eq.s32.totalorder %s14, 1
      %p31 = por %p29, %p30
      %p32 = scmp.ne.s32.totalorder %s24, %s27
      %p33 = scmp.eq.s32.totalorder %s14, 0
      %p34 = por %p32, %p33
      %p35 = scmp.ne.s32.totalorder %s24, %s27
      %p36 = scmp.eq.s32.totalorder %s19, 1
      %p37 = por %p35, %p36
      %p38 = scmp.ne.s32.totalorder %s27, %s28
      %p39 = scmp.eq.s32.totalorder %s19, 0
      %p40 = por %p38, %p39
      %p41 = scmp.ne.s32.totalorder %s27, %s28
      %p42 = scmp.eq.s32.totalorder %s20, 1
      %p43 = por %p41, %p42
      %p45 = scmp.ne.s32.totalorder %s28, %s44
      %p46 = scmp.eq.s32.totalorder %s20, 0
      %p47 = por %p45, %p46
      %s49 = sadd.s32 %s48, 1
      %p52 = scmp.eq.s32.totalorder %s14, 1
      %p53 = scmp.ne.s32.totalorder %s48, %s50
      %p54 = scmp.eq.s32.totalorder %s14, 0
      %p55 = por %p53, %p54
      %p56 = scmp.ne.s32.totalorder %s48, %s50
      %p57 = scmp.eq.s32.totalorder %s19, 1
      %p58 = por %p56, %p57
      %p59 = scmp.ne.s32.totalorder %s50, %s51
      %p60 = scmp.eq.s32.totalorder %s19, 0
      %p61 = por %p59, %p60
      %p62 = scmp.ne.s32.totalorder %s50, %s51
      %p63 = scmp.eq.s32.totalorder %s20, 1
      %p64 = por %p62, %p63
      %p66 = scmp.ne.s32.totalorder %s51, %s65
      %p67 = scmp.eq.s32.totalorder %s20, 0
      %p68 = por %p66, %p67
      %s70 = sadd.s32 %s69, 1
      %p73 = scmp.eq.s32.totalorder %s14, 1
      %p74 = scmp.ne.s32.totalorder %s69, %s71
      %p75 = scmp.eq.s32.totalorder %s14, 0
      %p76 = por %p74, %p75
      %p77 = scmp.ne.s32.totalorder %s69, %s71
      %p78 = scmp.eq.s32.totalorder %s19, 1
      %p79 = por %p77, %p78
      %p80 = scmp.ne.s32.totalorder %s71, %s72
      %p81 = scmp.eq.s32.totalorder %s19, 0
      %p82 = por %p80, %p81
      %p83 = scmp.ne.s32.totalorder %s71, %s72
      %p84 = scmp.eq.s32.totalorder %s20, 1
      %p85 = por %p83, %p84
      %p87 = scmp.ne.s32.totalorder %s72, %s86
      %p88 = scmp.eq.s32.totalorder %s20, 0
      %p89 = por %p87, %p88
      %s90 = ssub.s32 %s14, %s21
      %p91 = scmp.eq.s32.totalorder %s90, 0
      %s93 = sadd.s32 %s92, 1
      %s94 = scalar_select %p91, %s92, %s93
      %p97 = pneg %p91
      %p98 = scmp.eq.s32.totalorder %s14, 1
      %p99 = por %p97, %p98
      %p100 = scmp.ne.s32.totalorder %s92, %s95
      %p101 = scmp.eq.s32.totalorder %s14, 0
      %p102 = por %p100, %p101
      %p103 = scmp.ne.s32.totalorder %s92, %s95
      %p104 = scmp.eq.s32.totalorder %s19, 1
      %p105 = por %p103, %p104
      %p106 = scmp.ne.s32.totalorder %s95, %s96
      %p107 = scmp.eq.s32.totalorder %s19, 0
      %p108 = por %p106, %p107
      %p109 = scmp.ne.s32.totalorder %s95, %s96
      %p110 = scmp.eq.s32.totalorder %s20, 1
      %p111 = por %p109, %p110
      %p113 = scmp.ne.s32.totalorder %s96, %s112
      %p114 = scmp.eq.s32.totalorder %s20, 0
      %p115 = por %p113, %p114
      %p116 = scmp.le.s32.totalorder 1, %s14
      %p117 = scmp.lt.s32.totalorder %s14, 3
      %p118 = pnand %p116, %p117
      %p119 = pneg %p118
      // Predicated region
      $region9: #{tpu_custom_call.1} parent=5 // pred_check
        _
      $region10: #{tpu_custom_call.1} parent=5 // pred_check_branch
        %121 = sbr.rel (%p118) target = $region12
      $region11: #{tpu_custom_call.1} parent=5 // pred_region
        %s122 = ssub.s32 %s14, 1
        // Predicated region
        $region13: #{tpu_custom_call.1} parent=11 // pred_check
          %p123 = pneg %p61
        $region14: #{tpu_custom_call.1} parent=11 // pred_check_branch
          %125 = sbr.rel (%p123) target = $region16
        $region15: #{tpu_custom_call.1} parent=11 // pred_region
          %s127 = ssub.s32 64, 64
          %128 = vsyncadd [#allocation4], %s127
          %s130 = sshll.u32 %s1, 4
          %s131 = int_to_ptr.vmem [resolvable:$true] %s130
          %133 = dma.vmem_to_smem %s131, 64, [#allocation5], [#allocation4]
        $region16: #{tpu_custom_call.1} parent=11 // pred_fallthru
          _
        // Predicated region
        $region17: #{tpu_custom_call.1} parent=11 // pred_check
          %p134 = pneg %p82
        $region18: #{tpu_custom_call.1} parent=11 // pred_check_branch
          %136 = sbr.rel (%p134) target = $region20
        $region19: #{tpu_custom_call.1} parent=11 // pred_region
          %s138 = ssub.s32 128, 128
          %139 = vsyncadd [#allocation7], %s138
          %s141 = sshll.u32 %s2, 4
          %s142 = int_to_ptr.vmem [resolvable:$true] %s141
          %144 = dma.vmem_to_smem %s142, 128, [#allocation6], [#allocation7]
        $region20: #{tpu_custom_call.1} parent=11 // pred_fallthru
          _
      $region12: #{tpu_custom_call.1} parent=5 // pred_fallthru
        _
      %p145 = scmp.lt.s32.totalorder %s14, 2
      // Predicated region
      $region21: #{tpu_custom_call.1} parent=5 // pred_check
        %p146 = pneg %p145
      $region22: #{tpu_custom_call.1} parent=5 // pred_check_branch
        %148 = sbr.rel (%p146) target = $region24
      $region23: #{tpu_custom_call.1} parent=5 // pred_region
        // Predicated region
        $region25: #{tpu_custom_call.1} parent=23 // pred_check
          %p149 = pneg %p34
        $region26: #{tpu_custom_call.1} parent=23 // pred_check_branch
          %151 = sbr.rel (%p149) target = $region28
        $region27: #{tpu_custom_call.1} parent=23 // pred_region
          %s152 = sand.u32 %s24, 1
          %s153 = scalar_lea.sflag [#allocation3], %s152
          %s154 = sand.u32 %s24, 1
          %s155 = smul.addr %s154, 64
          %s156 = scalar_lea.vmem [#allocation2], %s155
          %s158 = ssub.s32 1024, 1024
          %159 = vsyncadd %s153, %s158
          %s160 = smul.addr %s14, 8
          %s161 = smul.addr %s160, 128
          %s162 = scalar_lea.hbm %s0, %s161
          %s163 = sshll.u32 %s156, 4
          %s164 = int_to_ptr.vmem [resolvable:$true] %s163
          %169 = dma.hbm_to_vmem [thread:$0]  %s162, 1024, %s164, %s153, 128, 128, 8
        $region28: #{tpu_custom_call.1} parent=23 // pred_fallthru
          _
      $region24: #{tpu_custom_call.1} parent=5 // pred_fallthru
        _
      %p170 = scmp.le.s32.totalorder 1, %s14
      %p171 = scmp.lt.s32.totalorder %s14, 3
      %p172 = pnand %p170, %p171
      %p173 = pneg %p172
      // Predicated region
      $region29: #{tpu_custom_call.1} parent=5 // pred_check
        _
      $region30: #{tpu_custom_call.1} parent=5 // pred_check_branch
        %175 = sbr.rel (%p172) target = $region32
      $region31: #{tpu_custom_call.1} parent=5 // pred_region
        %s176 = ssub.s32 %s14, 1
        %s177 = sand.u32 %s27, 1
        %s178 = scalar_lea.sflag [#allocation3], %s177
        %s179 = sand.u32 %s27, 1
        %s180 = smul.addr %s179, 64
        %s181 = scalar_lea.vmem [#allocation2], %s180
        // Predicated region
        $region33: #{tpu_custom_call.1} parent=31 // pred_check
          %p182 = pneg %p40
        $region34: #{tpu_custom_call.1} parent=31 // pred_check_branch
          %184 = sbr.rel (%p182) target = $region36
        $region35: #{tpu_custom_call.1} parent=31 // pred_region
          %185 = dma.done %s178, 1024
        $region36: #{tpu_custom_call.1} parent=31 // pred_fallthru
          _
        // Predicated region
        $region37: #{tpu_custom_call.1} parent=31 // pred_check
          %p186 = pneg %p61
        $region38: #{tpu_custom_call.1} parent=31 // pred_check_branch
          %188 = sbr.rel (%p186) target = $region40
        $region39: #{tpu_custom_call.1} parent=31 // pred_region
          %189 = dma.done [#allocation4], 64
        $region40: #{tpu_custom_call.1} parent=31 // pred_fallthru
          _
        // Predicated region
        $region41: #{tpu_custom_call.1} parent=31 // pred_check
          %p190 = pneg %p82
        $region42: #{tpu_custom_call.1} parent=31 // pred_check_branch
          %192 = sbr.rel (%p190) target = $region44
        $region43: #{tpu_custom_call.1} parent=31 // pred_region
          %193 = dma.done [#allocation7], 128
        $region44: #{tpu_custom_call.1} parent=31 // pred_fallthru
          _
        %194 = sfence
        %s195 = sand.u32 %s27, 1
        %s196 = scalar_lea.sflag [#allocation3], %s195
        %s197 = sand.u32 %s27, 1
        %s198 = smul.addr %s197, 64
        %s199 = scalar_lea.vmem [#allocation2], %s198
        %p200 = pneg %p40
        %p201 = pneg %p37
        %p202 = pneg %p61
        %p203 = pneg %p58
        %p204 = pneg %p82
        %p205 = pneg %p79
        %p206 = pneg %p108
        %p207 = pneg %p105
        %p208 = scmp.lt.s32.totalorder %s19, 1
        %s209 = scalar_select %p208, %s19, 1
        %s210 = smul.addr %s209, 16
        %s211 = smul.addr %s210, 8
        %s212 = scalar_lea.vmem %s3, %s211
        %p213 = scmp.lt.s32.totalorder %s19, 1
        %s214 = scalar_select %p213, %s19, 1
        %s215 = smul.addr %s214, 16
        %s216 = smul.addr %s215, 8
        %s217 = scalar_lea.vmem %s3, %s216
        %v218 = vld [vmem:[%s181] sm:$0xff]
        %v219 = vld [vmem:[%s181 + $0x8] sm:$0xff]
        %s220 = sld [smem:[#allocation5]]
        %v221 = vstv %s220
        %v222 = vmul.f32 %v218, %v221
        %v223 = vmul.f32 %v219, %v221
        %s224 = sld [smem:[#allocation5 + $0x1]]
        %v225 = vstv %s224
        %v226 = vmul.f32 %v218, %v225
        %v227 = vmul.f32 %v219, %v225
        %230 = vrot.lane.b32.xlu0 %v226, 127
        %v231 = vpop.permute.xlu0 %230
        %232 = vrot.lane.b32.xlu0 %v227, 127
        %v233 = vpop.permute.xlu0 %232
        %v236 = vadd.f32 %v222, %v231
        %v237 = vadd.f32 %v223, %v233
        %s238 = sld [smem:[#allocation5 + $0x2]]
        %v239 = vstv %s238
        %v240 = vmul.f32 %v218, %v239
        %v241 = vmul.f32 %v219, %v239
        %vm244 = vcmask 1046528
        %v245 = vrot.slane %v240, 1
        %v246 = vrot.slane %v241, 1
        %v247 = vsel %vm244, %v245, %v246
        %v250 = vadd.f32 %v236, %v247
        %v251 = vadd.f32 %v237, %v246
        %s252 = sld [smem:[#allocation5 + $0x3]]
        %v253 = vstv %s252
        %v254 = vmul.f32 %v218, %v253
        %v255 = vmul.f32 %v219, %v253
        %v258 = vrot.slane %v254, 1
        %v259 = vrot.slane %v255, 1
        %v260 = vsel %vm244, %v258, %v259
        %261 = vrot.lane.b32.xlu0 %v260, 127
        %v262 = vpop.permute.xlu0 %261
        %263 = vrot.lane.b32.xlu0 %v259, 127
        %v264 = vpop.permute.xlu0 %263
        %v267 = vadd.f32 %v250, %v262
        %v268 = vadd.f32 %v251, %v264
        %s269 = scalar_lea.vmem %s181, 16 [#allocation2]
        %v270 = vld [vmem:[%s269] sm:$0xff]
        %v271 = vld [vmem:[%s269 + $0x8] sm:$0xff]
        %s272 = sld [smem:[#allocation5 + $0x80]]
        %v273 = vstv %s272
        %v274 = vmul.f32 %v270, %v273
        %v275 = vmul.f32 %v271, %v273
        %s276 = sld [smem:[#allocation5 + $0x81]]
        %v277 = vstv %s276
        %v278 = vmul.f32 %v270, %v277
        %v279 = vmul.f32 %v271, %v277
        %282 = vrot.lane.b32.xlu0 %v278, 127
        %v283 = vpop.permute.xlu0 %282
        %284 = vrot.lane.b32.xlu0 %v279, 127
        %v285 = vpop.permute.xlu0 %284
        %v288 = vadd.f32 %v274, %v283
        %v289 = vadd.f32 %v275, %v285
        %s290 = sld [smem:[#allocation5 + $0x82]]
        %v291 = vstv %s290
        %v292 = vmul.f32 %v270, %v291
        %v293 = vmul.f32 %v271, %v291
        %v296 = vrot.slane %v292, 1
        %v297 = vrot.slane %v293, 1
        %v298 = vsel %vm244, %v296, %v297
        %v301 = vadd.f32 %v288, %v298
        %v302 = vadd.f32 %v289, %v297
        %s303 = sld [smem:[#allocation5 + $0x83]]
        %v304 = vstv %s303
        %v305 = vmul.f32 %v270, %v304
        %v306 = vmul.f32 %v271, %v304
        %v309 = vrot.slane %v305, 1
        %v310 = vrot.slane %v306, 1
        %v311 = vsel %vm244, %v309, %v310
        %312 = vrot.lane.b32.xlu0 %v311, 127
        %v313 = vpop.permute.xlu0 %312
        %314 = vrot.lane.b32.xlu0 %v310, 127
        %v315 = vpop.permute.xlu0 %314
        %v318 = vadd.f32 %v301, %v313
        %v319 = vadd.f32 %v302, %v315
        %s320 = scalar_lea.vmem %s181, 32 [#allocation2]
        %v321 = vld [vmem:[%s320] sm:$0xff]
        %v322 = vld [vmem:[%s320 + $0x8] sm:$0xff]
        %s323 = sld [smem:[#allocation5 + $0x100]]
        %v324 = vstv %s323
        %v325 = vmul.f32 %v321, %v324
        %v326 = vmul.f32 %v322, %v324
        %s327 = sld [smem:[#allocation5 + $0x101]]
        %v328 = vstv %s327
        %v329 = vmul.f32 %v321, %v328
        %v330 = vmul.f32 %v322, %v328
        %333 = vrot.lane.b32.xlu0 %v329, 127
        %v334 = vpop.permute.xlu0 %333
        %335 = vrot.lane.b32.xlu0 %v330, 127
        %v336 = vpop.permute.xlu0 %335
        %v339 = vadd.f32 %v325, %v334
        %v340 = vadd.f32 %v326, %v336
        %s341 = sld [smem:[#allocation5 + $0x102]]
        %v342 = vstv %s341
        %v343 = vmul.f32 %v321, %v342
        %v344 = vmul.f32 %v322, %v342
        %v347 = vrot.slane %v343, 1
        %v348 = vrot.slane %v344, 1
        %v349 = vsel %vm244, %v347, %v348
        %v352 = vadd.f32 %v339, %v349
        %v353 = vadd.f32 %v340, %v348
        %s354 = sld [smem:[#allocation5 + $0x103]]
        %v355 = vstv %s354
        %v356 = vmul.f32 %v321, %v355
        %v357 = vmul.f32 %v322, %v355
        %v360 = vrot.slane %v356, 1
        %v361 = vrot.slane %v357, 1
        %v362 = vsel %vm244, %v360, %v361
        %363 = vrot.lane.b32.xlu0 %v362, 127
        %v364 = vpop.permute.xlu0 %363
        %365 = vrot.lane.b32.xlu0 %v361, 127
        %v366 = vpop.permute.xlu0 %365
        %v369 = vadd.f32 %v352, %v364
        %v370 = vadd.f32 %v353, %v366
        %s371 = scalar_lea.vmem %s181, 48 [#allocation2]
        %v372 = vld [vmem:[%s371] sm:$0xff]
        %v373 = vld [vmem:[%s371 + $0x8] sm:$0xff]
        %s374 = sld [smem:[#allocation5 + $0x180]]
        %v375 = vstv %s374
        %v376 = vmul.f32 %v372, %v375
        %v377 = vmul.f32 %v373, %v375
        %s378 = sld [smem:[#allocation5 + $0x181]]
        %v379 = vstv %s378
        %v380 = vmul.f32 %v372, %v379
        %v381 = vmul.f32 %v373, %v379
        %384 = vrot.lane.b32.xlu0 %v380, 127
        %v385 = vpop.permute.xlu0 %384
        %386 = vrot.lane.b32.xlu0 %v381, 127
        %v387 = vpop.permute.xlu0 %386
        %v390 = vadd.f32 %v376, %v385
        %v391 = vadd.f32 %v377, %v387
        %s392 = sld [smem:[#allocation5 + $0x182]]
        %v393 = vstv %s392
        %v394 = vmul.f32 %v372, %v393
        %v395 = vmul.f32 %v373, %v393
        %v398 = vrot.slane %v394, 1
        %v399 = vrot.slane %v395, 1
        %v400 = vsel %vm244, %v398, %v399
        %v403 = vadd.f32 %v390, %v400
        %v404 = vadd.f32 %v391, %v399
        %s405 = sld [smem:[#allocation5 + $0x183]]
        %v406 = vstv %s405
        %v407 = vmul.f32 %v372, %v406
        %v408 = vmul.f32 %v373, %v406
        %v411 = vrot.slane %v407, 1
        %v412 = vrot.slane %v408, 1
        %v413 = vsel %vm244, %v411, %v412
        %414 = vrot.lane.b32.xlu0 %v413, 127
        %v415 = vpop.permute.xlu0 %414
        %416 = vrot.lane.b32.xlu0 %v412, 127
        %v417 = vpop.permute.xlu0 %416
        %v420 = vadd.f32 %v403, %v415
        %v421 = vadd.f32 %v404, %v417
        %s422 = sld [smem:[#allocation6]]
        %v423 = vstv %s422
        %v424 = vmul.f32 %v267, %v423
        %v425 = vmul.f32 %v268, %v423
        %s426 = sld [smem:[#allocation6 + $0x1]]
        %v427 = vstv %s426
        %v428 = vmul.f32 %v318, %v427
        %v429 = vmul.f32 %v319, %v427
        %v430 = vadd.f32 %v424, %v428
        %v431 = vadd.f32 %v425, %v429
        %s432 = sld [smem:[#allocation6 + $0x2]]
        %v433 = vstv %s432
        %v434 = vmul.f32 %v369, %v433
        %v435 = vmul.f32 %v370, %v433
        %v436 = vadd.f32 %v430, %v434
        %v437 = vadd.f32 %v431, %v435
        %s438 = sld [smem:[#allocation6 + $0x3]]
        %v439 = vstv %s438
        %v440 = vmul.f32 %v420, %v439
        %v441 = vmul.f32 %v421, %v439
        %v442 = vadd.f32 %v436, %v440
        %v443 = vadd.f32 %v437, %v441
        %vm444 = vcmask 121856
        %445 = vst.msk [vmem:[%s217] sm:$0xff] %vm444, %v442
        %vm446 = vcmask 120832
        %447 = vst.msk [vmem:[%s217 + $0x8] sm:$0x7f] %vm446, %v443
        %s448 = sld [smem:[#allocation6 + $0x80]]
        %v449 = vstv %s448
        %v450 = vmul.f32 %v267, %v449
        %v451 = vmul.f32 %v268, %v449
        %s452 = sld [smem:[#allocation6 + $0x81]]
        %v453 = vstv %s452
        %v454 = vmul.f32 %v318, %v453
        %v455 = vmul.f32 %v319, %v453
        %v456 = vadd.f32 %v450, %v454
        %v457 = vadd.f32 %v451, %v455
        %s458 = sld [smem:[#allocation6 + $0x82]]
        %v459 = vstv %s458
        %v460 = vmul.f32 %v369, %v459
        %v461 = vmul.f32 %v370, %v459
        %v462 = vadd.f32 %v456, %v460
        %v463 = vadd.f32 %v457, %v461
        %s464 = sld [smem:[#allocation6 + $0x83]]
        %v465 = vstv %s464
        %v466 = vmul.f32 %v420, %v465
        %v467 = vmul.f32 %v421, %v465
        %v468 = vadd.f32 %v462, %v466
        %v469 = vadd.f32 %v463, %v467
        %s470 = scalar_lea.vmem %s217, 16
        %471 = vst.msk [vmem:[%s470] sm:$0xff] %vm444, %v468
        %472 = vst.msk [vmem:[%s470 + $0x8] sm:$0x7f] %vm446, %v469
        %s473 = sld [smem:[#allocation6 + $0x100]]
        %v474 = vstv %s473
        %v475 = vmul.f32 %v267, %v474
        %v476 = vmul.f32 %v268, %v474
        %s477 = sld [smem:[#allocation6 + $0x101]]
        %v478 = vstv %s477
        %v479 = vmul.f32 %v318, %v478
        %v480 = vmul.f32 %v319, %v478
        %v481 = vadd.f32 %v475, %v479
        %v482 = vadd.f32 %v476, %v480
        %s483 = sld [smem:[#allocation6 + $0x102]]
        %v484 = vstv %s483
        %v485 = vmul.f32 %v369, %v484
        %v486 = vmul.f32 %v370, %v484
        %v487 = vadd.f32 %v481, %v485
        %v488 = vadd.f32 %v482, %v486
        %s489 = sld [smem:[#allocation6 + $0x103]]
        %v490 = vstv %s489
        %v491 = vmul.f32 %v420, %v490
        %v492 = vmul.f32 %v421, %v490
        %v493 = vadd.f32 %v487, %v491
        %v494 = vadd.f32 %v488, %v492
        %s495 = scalar_lea.vmem %s217, 32
        %496 = vst.msk [vmem:[%s495] sm:$0xff] %vm444, %v493
        %497 = vst.msk [vmem:[%s495 + $0x8] sm:$0x7f] %vm446, %v494
        %s498 = sld [smem:[#allocation6 + $0x180]]
        %v499 = vstv %s498
        %v500 = vmul.f32 %v267, %v499
        %v501 = vmul.f32 %v268, %v499
        %s502 = sld [smem:[#allocation6 + $0x181]]
        %v503 = vstv %s502
        %v504 = vmul.f32 %v318, %v503
        %v505 = vmul.f32 %v319, %v503
        %v506 = vadd.f32 %v500, %v504
        %v507 = vadd.f32 %v501, %v505
        %s508 = sld [smem:[#allocation6 + $0x182]]
        %v509 = vstv %s508
        %v510 = vmul.f32 %v369, %v509
        %v511 = vmul.f32 %v370, %v509
        %v512 = vadd.f32 %v506, %v510
        %v513 = vadd.f32 %v507, %v511
        %s514 = sld [smem:[#allocation6 + $0x183]]
        %v515 = vstv %s514
        %v516 = vmul.f32 %v420, %v515
        %v517 = vmul.f32 %v421, %v515
        %v518 = vadd.f32 %v512, %v516
        %v519 = vadd.f32 %v513, %v517
        %s520 = scalar_lea.vmem %s217, 48
        %521 = vst.msk [vmem:[%s520] sm:$0xff] %vm444, %v518
        %522 = vst.msk [vmem:[%s520 + $0x8] sm:$0x7f] %vm446, %v519
        %s523 = sld [smem:[#allocation6 + $0x200]]
        %v524 = vstv %s523
        %v525 = vmul.f32 %v267, %v524
        %v526 = vmul.f32 %v268, %v524
        %s527 = sld [smem:[#allocation6 + $0x201]]
        %v528 = vstv %s527
        %v529 = vmul.f32 %v318, %v528
        %v530 = vmul.f32 %v319, %v528
        %v531 = vadd.f32 %v525, %v529
        %v532 = vadd.f32 %v526, %v530
        %s533 = sld [smem:[#allocation6 + $0x202]]
        %v534 = vstv %s533
        %v535 = vmul.f32 %v369, %v534
        %v536 = vmul.f32 %v370, %v534
        %v537 = vadd.f32 %v531, %v535
        %v538 = vadd.f32 %v532, %v536
        %s539 = sld [smem:[#allocation6 + $0x203]]
        %v540 = vstv %s539
        %v541 = vmul.f32 %v420, %v540
        %v542 = vmul.f32 %v421, %v540
        %v543 = vadd.f32 %v537, %v541
        %v544 = vadd.f32 %v538, %v542
        %s545 = scalar_lea.vmem %s217, 64
        %546 = vst.msk [vmem:[%s545] sm:$0xff] %vm444, %v543
        %547 = vst.msk [vmem:[%s545 + $0x8] sm:$0x7f] %vm446, %v544
        %s548 = sld [smem:[#allocation6 + $0x280]]
        %v549 = vstv %s548
        %v550 = vmul.f32 %v267, %v549
        %v551 = vmul.f32 %v268, %v549
        %s552 = sld [smem:[#allocation6 + $0x281]]
        %v553 = vstv %s552
        %v554 = vmul.f32 %v318, %v553
        %v555 = vmul.f32 %v319, %v553
        %v556 = vadd.f32 %v550, %v554
        %v557 = vadd.f32 %v551, %v555
        %s558 = sld [smem:[#allocation6 + $0x282]]
        %v559 = vstv %s558
        %v560 = vmul.f32 %v369, %v559
        %v561 = vmul.f32 %v370, %v559
        %v562 = vadd.f32 %v556, %v560
        %v563 = vadd.f32 %v557, %v561
        %s564 = sld [smem:[#allocation6 + $0x283]]
        %v565 = vstv %s564
        %v566 = vmul.f32 %v420, %v565
        %v567 = vmul.f32 %v421, %v565
        %v568 = vadd.f32 %v562, %v566
        %v569 = vadd.f32 %v563, %v567
        %s570 = scalar_lea.vmem %s217, 80
        %571 = vst.msk [vmem:[%s570] sm:$0xff] %vm444, %v568
        %572 = vst.msk [vmem:[%s570 + $0x8] sm:$0x7f] %vm446, %v569
        %s573 = sld [smem:[#allocation6 + $0x300]]
        %v574 = vstv %s573
        %v575 = vmul.f32 %v267, %v574
        %v576 = vmul.f32 %v268, %v574
        %s577 = sld [smem:[#allocation6 + $0x301]]
        %v578 = vstv %s577
        %v579 = vmul.f32 %v318, %v578
        %v580 = vmul.f32 %v319, %v578
        %v581 = vadd.f32 %v575, %v579
        %v582 = vadd.f32 %v576, %v580
        %s583 = sld [smem:[#allocation6 + $0x302]]
        %v584 = vstv %s583
        %v585 = vmul.f32 %v369, %v584
        %v586 = vmul.f32 %v370, %v584
        %v587 = vadd.f32 %v581, %v585
        %v588 = vadd.f32 %v582, %v586
        %s589 = sld [smem:[#allocation6 + $0x303]]
        %v590 = vstv %s589
        %v591 = vmul.f32 %v420, %v590
        %v592 = vmul.f32 %v421, %v590
        %v593 = vadd.f32 %v587, %v591
        %v594 = vadd.f32 %v588, %v592
        %s595 = scalar_lea.vmem %s217, 96
        %596 = vst.msk [vmem:[%s595] sm:$0xff] %vm444, %v593
        %597 = vst.msk [vmem:[%s595 + $0x8] sm:$0x7f] %vm446, %v594
        %s598 = sld [smem:[#allocation6 + $0x380]]
        %v599 = vstv %s598
        %v600 = vmul.f32 %v267, %v599
        %v601 = vmul.f32 %v268, %v599
        %s602 = sld [smem:[#allocation6 + $0x381]]
        %v603 = vstv %s602
        %v604 = vmul.f32 %v318, %v603
        %v605 = vmul.f32 %v319, %v603
        %v606 = vadd.f32 %v600, %v604
        %v607 = vadd.f32 %v601, %v605
        %s608 = sld [smem:[#allocation6 + $0x382]]
        %v609 = vstv %s608
        %v610 = vmul.f32 %v369, %v609
        %v611 = vmul.f32 %v370, %v609
        %v612 = vadd.f32 %v606, %v610
        %v613 = vadd.f32 %v607, %v611
        %s614 = sld [smem:[#allocation6 + $0x383]]
        %v615 = vstv %s614
        %v616 = vmul.f32 %v420, %v615
        %v617 = vmul.f32 %v421, %v615
        %v618 = vadd.f32 %v612, %v616
        %v619 = vadd.f32 %v613, %v617
        %s620 = scalar_lea.vmem %s217, 112
        %621 = vst.msk [vmem:[%s620] sm:$0xff] %vm444, %v618
        %622 = vst.msk [vmem:[%s620 + $0x8] sm:$0x7f] %vm446, %v619
        %p623 = scmp.lt.s32.totalorder %s19, 1
        %s624 = scalar_select %p623, %s19, 1
        %s625 = smul.addr %s624, 16
        %s626 = smul.addr %s625, 8
        %s627 = scalar_lea.vmem %s3, %s626
        // Predicated region
        $region45: #{tpu_custom_call.1} parent=31 // pred_check
          %p628 = pneg %p105
        $region46: #{tpu_custom_call.1} parent=31 // pred_check_branch
          %630 = sbr.rel (%p628) target = $region48
        $region47: #{tpu_custom_call.1} parent=31 // pred_region
          _
        $region48: #{tpu_custom_call.1} parent=31 // pred_fallthru
          _
      $region32: #{tpu_custom_call.1} parent=5 // pred_fallthru
        _
      %p631 = scmp.le.s32.totalorder 2, %s14
      // Predicated region
      $region49: #{tpu_custom_call.1} parent=5 // pred_check
        %p632 = pneg %p631
      $region50: #{tpu_custom_call.1} parent=5 // pred_check_branch
        %634 = sbr.rel (%p632) target = $region52
      $region51: #{tpu_custom_call.1} parent=5 // pred_region
        %s635 = ssub.s32 %s14, 2
        // Predicated region
        $region53: #{tpu_custom_call.1} parent=51 // pred_check
          %p636 = pneg %p111
        $region54: #{tpu_custom_call.1} parent=51 // pred_check_branch
          %638 = sbr.rel (%p636) target = $region56
        $region55: #{tpu_custom_call.1} parent=51 // pred_region
          %p639 = scmp.lt.s32.totalorder %s20, 1
          %s640 = scalar_select %p639, %s20, 1
          %s641 = smul.addr %s640, 16
          %s642 = smul.addr %s641, 8
          %s643 = scalar_lea.vmem %s3, %s642
        $region56: #{tpu_custom_call.1} parent=51 // pred_fallthru
          _
      $region52: #{tpu_custom_call.1} parent=5 // pred_fallthru
        _
    $region6: #{tpu_custom_call.1} parent=1 // loop_footer
      %s18 = sadd.s32 1, %s14
    $region7: #{tpu_custom_call.1} parent=1 // loop_footer_branch
      %13 = sbr.rel target = $region3
    $region8: #{tpu_custom_call.1} parent=1 // loop_exit
      _
    %644 = vsyncpa [#allocation3], 1
    %s645 = scalar_lea.sflag [#allocation3], 1
    %646 = vsyncpa %s645, 1
    %647 = vsyncpa [#allocation4], 1
    %s648 = scalar_lea.sflag [#allocation4], 1
    %649 = vsyncpa %s648, 1
    %650 = vsyncpa [#allocation7], 1

</llo_original>
